<compile_context>
chip_gen: v7x
topology: tpu7x:2x2x1
jax: 0.10.0
libtpu: 0.0.40
codegen_flags: <defaults>
</compile_context>

<pallas_src>
import jax
import jax.numpy as jnp
from jax import lax
from jax.experimental import pallas as pl
from jax.experimental.pallas import tpu as pltpu

HIDDEN = 100       # logical hidden width (matches nn.Linear(..., 100))
HIDDEN_PAD = 128   # lane-dense padded hidden width

# Small compat shim (reference API name is CompilerParams).
_CompilerParams = getattr(pltpu, "CompilerParams", None) or getattr(pltpu, "TPUCompilerParams")


def _round_up(x, m):
    return (x + m - 1) // m * m


def _critic_kernel(state_ref, action_ref,
                   w1_ref, b1_ref,
                   w2h_ref, w2a_ref, b2_ref,
                   w3t_ref, b3_ref,
                   out_ref):
    # ---- fc1 + ReLU (MXU, f32 accumulation; bias/ReLU in f32 on the VPU) ----
    h1 = jnp.dot(state_ref[...], w1_ref[...], preferred_element_type=jnp.float32)
    h1 = jnp.maximum(h1 + b1_ref[...], 0.0)                       # (tm, 128) f32

    # ---- fc2 on concat([h1, action]) == h1 @ W2_h + action @ W2_a + b2 ----
    h1c = h1.astype(w2h_ref.dtype)                                # no-op in f32 mode
    h2 = (jnp.dot(h1c, w2h_ref[...], preferred_element_type=jnp.float32)
          + jnp.dot(action_ref[...], w2a_ref[...], preferred_element_type=jnp.float32))
    h2 = jnp.maximum(h2 + b2_ref[...], 0.0)                       # (tm, 128) f32

    # ---- fc3, emitted lane-dense: (1,128) . (tm,128)^T -> (1, tm) ----
    h2c = h2.astype(w3t_ref.dtype)
    q = lax.dot_general(w3t_ref[...], h2c,
                        dimension_numbers=(((1,), (1,)), ((), ())),
                        preferred_element_type=jnp.float32)       # (1, tm)
    out_ref[...] = q + b3_ref[...]


def critic_forward(state, action, params, *, compute_dtype=jnp.float32, tm=512):
    """state: [B, state_size], action: [B, action_size] -> [B, 1] float32."""
    w1, b1, w2, b2, w3, b3 = params          # weights stored [in, out]
    B, S = state.shape
    A = action.shape[1]

    # Split fc2 weight (exact concat trick) and zero-pad hidden 100 -> 128.
    hp = HIDDEN_PAD - HIDDEN
    w2h, w2a = w2[:HIDDEN], w2[HIDDEN:]
    w1p = jnp.pad(w1, ((0, 0), (0, hp))).astype(compute_dtype)            # (S, 128)
    w2hp = jnp.pad(w2h, ((0, hp), (0, hp))).astype(compute_dtype)         # (128, 128)
    w2ap = jnp.pad(w2a, ((0, 0), (0, hp))).astype(compute_dtype)          # (A, 128)
    w3tp = jnp.pad(w3.T, ((0, 0), (0, hp))).astype(compute_dtype)         # (1, 128)
    b1p = jnp.pad(b1.reshape(1, -1), ((0, 0), (0, hp))).astype(jnp.float32)
    b2p = jnp.pad(b2.reshape(1, -1), ((0, 0), (0, hp))).astype(jnp.float32)
    b3p = b3.reshape(1, 1).astype(jnp.float32)

    # Batch tiling (pad the batch tail with zeros; padded rows are sliced off below).
    if B <= tm:
        tm = max(8, _round_up(B, 8))
    else:
        tm = _round_up(tm, 128)     # keep the lane-dense output block a multiple of 128
    B_pad = _round_up(B, tm)
    if B_pad != B:
        state = jnp.pad(state, ((0, B_pad - B), (0, 0)))
        action = jnp.pad(action, ((0, B_pad - B), (0, 0)))
    state = state.astype(compute_dtype)
    action = action.astype(compute_dtype)

    const = lambda i: (0, 0)   # weights/biases: same block every step -> VMEM-resident
    out = pl.pallas_call(
        _critic_kernel,
        out_shape=jax.ShapeDtypeStruct((1, B_pad), jnp.float32),
        grid=(B_pad // tm,),
        in_specs=[
            pl.BlockSpec((tm, S), lambda i: (i, 0)),               # state tile
            pl.BlockSpec((tm, A), lambda i: (i, 0)),               # action tile
            pl.BlockSpec((S, HIDDEN_PAD), const),                  # w1
            pl.BlockSpec((1, HIDDEN_PAD), const),                  # b1
            pl.BlockSpec((HIDDEN_PAD, HIDDEN_PAD), const),         # w2 (hidden part)
            pl.BlockSpec((A, HIDDEN_PAD), const),                  # w2 (action part)
            pl.BlockSpec((1, HIDDEN_PAD), const),                  # b2
            pl.BlockSpec((1, HIDDEN_PAD), const),                  # w3^T
            pl.BlockSpec((1, 1), const),                           # b3
        ],
        out_specs=pl.BlockSpec((1, tm), lambda i: (0, i)),         # lane-dense output
        compiler_params=_CompilerParams(dimension_semantics=("parallel",)),
    )(state, action, w1p, b1p, w2hp, w2ap, b2p, w3tp, b3p)

    return out[0, :B].reshape(B, 1)


def init_params(key, state_size, action_size):
    """nn.Linear-style U(-1/sqrt(fan_in), 1/sqrt(fan_in)) init; weights stored [in, out]."""
    def linear(k, fan_in, fan_out):
        kw, kb = jax.random.split(k)
        bound = 1.0 / jnp.sqrt(float(fan_in))
        w = jax.random.uniform(kw, (fan_in, fan_out), jnp.float32, -bound, bound)
        b = jax.random.uniform(kb, (fan_out,), jnp.float32, -bound, bound)
        return w, b

    k1, k2, k3 = jax.random.split(key, 3)
    w1, b1 = linear(k1, state_size, HIDDEN)
    w2, b2 = linear(k2, HIDDEN + action_size, HIDDEN)
    w3, b3 = linear(k3, HIDDEN, 1)
    return (w1, b1, w2, b2, w3, b3)


def critic_reference(state, action, params):
    """Pure-JAX reference matching the PyTorch forward exactly."""
    w1, b1, w2, b2, w3, b3 = params
    x = jax.nn.relu(state @ w1 + b1)
    x = jnp.concatenate([x, action], axis=1)
    x = jax.nn.relu(x @ w2 + b2)
    return x @ w3 + b3


if __name__ == "__main__":
    state_size, action_size, batch = 8, 4, 8

    key = jax.random.PRNGKey(0)
    kp, ks, ka = jax.random.split(key, 3)

    params = init_params(kp, state_size, action_size)
    state = jax.random.normal(ks, (batch, state_size), jnp.float32)
    action = jax.random.normal(ka, (batch, action_size), jnp.float32)

    # Small batch, single tile, f32 (exact semantics of the PyTorch module).
    out = jax.block_until_ready(critic_forward(state, action, params))
    ref = critic_reference(state, action, params)
    assert out.shape == (batch, 1), out.shape
    assert jnp.allclose(out, ref, atol=1e-4, rtol=1e-4), (out, ref)

    # Multi-tile grid + batch-tail padding path (B=300, tm=128 -> 3 grid steps).
    B2 = 300
    ks2, ka2 = jax.random.split(jax.random.PRNGKey(1))
    state2 = jax.random.normal(ks2, (B2, state_size), jnp.float32)
    action2 = jax.random.normal(ka2, (B2, action_size), jnp.float32)
    out2 = jax.block_until_ready(critic_forward(state2, action2, params, tm=128))
    ref2 = critic_reference(state2, action2, params)
    assert out2.shape == (B2, 1), out2.shape
    assert jnp.allclose(out2, ref2, atol=1e-4, rtol=1e-4)

    # bf16 MXU path with f32 accumulation (looser tolerance by construction).
    out3 = jax.block_until_ready(
        critic_forward(state2, action2, params, compute_dtype=jnp.bfloat16, tm=128))
    assert out3.shape == (B2, 1), out3.shape
    assert jnp.allclose(out3, ref2, atol=5e-2, rtol=5e-2)

    print("KERNEL_OK")
</pallas_src>

<mosaic_0001>
module attributes {stable_mosaic.version = 11 : i64} {
  func.func @_critic_kernel(%arg0: i32, %arg1: memref<8x8xf32, #tpu.memory_space<vmem>>, %arg2: memref<8x4xf32, #tpu.memory_space<vmem>>, %arg3: memref<8x128xf32, #tpu.memory_space<vmem>>, %arg4: memref<1x128xf32, #tpu.memory_space<vmem>>, %arg5: memref<128x128xf32, #tpu.memory_space<vmem>>, %arg6: memref<4x128xf32, #tpu.memory_space<vmem>>, %arg7: memref<1x128xf32, #tpu.memory_space<vmem>>, %arg8: memref<1x128xf32, #tpu.memory_space<vmem>>, %arg9: memref<1x1xf32, #tpu.memory_space<vmem>>, %arg10: memref<1x8xf32, #tpu.memory_space<vmem>>) attributes {dimension_semantics = [#tpu.dimension_semantics<parallel>], iteration_bounds = array<i64: 1>, scalar_prefetch = 0 : i64, scratch_operands = 0 : i64, tpu.core_type = #tpu.core_type<tc>, window_params = [{transform_indices = @transform_0, window_bounds = array<i64: 8, 8>}, {transform_indices = @transform_1, window_bounds = array<i64: 8, 4>}, {pipeline_mode = #tpu.pipeline_mode<synchronous>, transform_indices = @transform_2, window_bounds = array<i64: 8, 128>}, {pipeline_mode = #tpu.pipeline_mode<synchronous>, transform_indices = @transform_3, window_bounds = array<i64: 1, 128>}, {pipeline_mode = #tpu.pipeline_mode<synchronous>, transform_indices = @transform_4, window_bounds = array<i64: 128, 128>}, {pipeline_mode = #tpu.pipeline_mode<synchronous>, transform_indices = @transform_5, window_bounds = array<i64: 4, 128>}, {pipeline_mode = #tpu.pipeline_mode<synchronous>, transform_indices = @transform_6, window_bounds = array<i64: 1, 128>}, {pipeline_mode = #tpu.pipeline_mode<synchronous>, transform_indices = @transform_7, window_bounds = array<i64: 1, 128>}, {pipeline_mode = #tpu.pipeline_mode<synchronous>, transform_indices = @transform_8, window_bounds = array<i64: 1, 1>}, {transform_indices = @transform_9, window_bounds = array<i64: 1, 8>}]} {
    %c0 = arith.constant 0 : index
    %c0_0 = arith.constant 0 : index
    %0 = vector.load %arg1[%c0, %c0_0] : memref<8x8xf32, #tpu.memory_space<vmem>>, vector<8x8xf32>
    %c0_1 = arith.constant 0 : index
    %c0_2 = arith.constant 0 : index
    %1 = vector.load %arg3[%c0_1, %c0_2] : memref<8x128xf32, #tpu.memory_space<vmem>>, vector<8x128xf32>
    %cst = arith.constant dense<0.000000e+00> : vector<8x128xf32>
    %2 = tpu.matmul %0, %1, %cst {dimension_numbers = #tpu.dot_dimension_numbers<[1], [0], [0], [1], [0, 0, 1, 1], [], []>} : vector<8x8xf32>, vector<8x128xf32>, vector<8x128xf32> -> vector<8x128xf32>
    %c0_3 = arith.constant 0 : index
    %c0_4 = arith.constant 0 : index
    %3 = vector.load %arg4[%c0_3, %c0_4] : memref<1x128xf32, #tpu.memory_space<vmem>>, vector<1x128xf32>
    %4 = vector.broadcast %3 : vector<1x128xf32> to vector<8x128xf32>
    %5 = arith.addf %2, %4 : vector<8x128xf32>
    %cst_5 = arith.constant 0.000000e+00 : f32
    %6 = vector.broadcast %cst_5 : f32 to vector<8x128xf32>
    %7 = arith.maximumf %5, %6 : vector<8x128xf32>
    %c0_6 = arith.constant 0 : index
    %c0_7 = arith.constant 0 : index
    %8 = vector.load %arg5[%c0_6, %c0_7] : memref<128x128xf32, #tpu.memory_space<vmem>>, vector<128x128xf32>
    %cst_8 = arith.constant dense<0.000000e+00> : vector<8x128xf32>
    %9 = tpu.matmul %7, %8, %cst_8 {dimension_numbers = #tpu.dot_dimension_numbers<[1], [0], [0], [1], [0, 0, 1, 1], [], []>} : vector<8x128xf32>, vector<128x128xf32>, vector<8x128xf32> -> vector<8x128xf32>
    %c0_9 = arith.constant 0 : index
    %c0_10 = arith.constant 0 : index
    %10 = vector.load %arg2[%c0_9, %c0_10] : memref<8x4xf32, #tpu.memory_space<vmem>>, vector<8x4xf32>
    %c0_11 = arith.constant 0 : index
    %c0_12 = arith.constant 0 : index
    %11 = vector.load %arg6[%c0_11, %c0_12] : memref<4x128xf32, #tpu.memory_space<vmem>>, vector<4x128xf32>
    %cst_13 = arith.constant dense<0.000000e+00> : vector<8x128xf32>
    %12 = tpu.matmul %10, %11, %cst_13 {dimension_numbers = #tpu.dot_dimension_numbers<[1], [0], [0], [1], [0, 0, 1, 1], [], []>} : vector<8x4xf32>, vector<4x128xf32>, vector<8x128xf32> -> vector<8x128xf32>
    %13 = arith.addf %9, %12 : vector<8x128xf32>
    %c0_14 = arith.constant 0 : index
    %c0_15 = arith.constant 0 : index
    %14 = vector.load %arg7[%c0_14, %c0_15] : memref<1x128xf32, #tpu.memory_space<vmem>>, vector<1x128xf32>
    %15 = vector.broadcast %14 : vector<1x128xf32> to vector<8x128xf32>
    %16 = arith.addf %13, %15 : vector<8x128xf32>
    %cst_16 = arith.constant 0.000000e+00 : f32
    %17 = vector.broadcast %cst_16 : f32 to vector<8x128xf32>
    %18 = arith.maximumf %16, %17 : vector<8x128xf32>
    %c0_17 = arith.constant 0 : index
    %c0_18 = arith.constant 0 : index
    %19 = vector.load %arg8[%c0_17, %c0_18] : memref<1x128xf32, #tpu.memory_space<vmem>>, vector<1x128xf32>
    %cst_19 = arith.constant dense<0.000000e+00> : vector<1x8xf32>
    %20 = tpu.matmul %19, %18, %cst_19 {dimension_numbers = #tpu.dot_dimension_numbers<[1], [1], [0], [0], [0, 0, 1, 0], [], []>} : vector<1x128xf32>, vector<8x128xf32>, vector<1x8xf32> -> vector<1x8xf32>
    %c0_20 = arith.constant 0 : index
    %c0_21 = arith.constant 0 : index
    %21 = vector.load %arg9[%c0_20, %c0_21] : memref<1x1xf32, #tpu.memory_space<vmem>>, vector<1x1xf32>
    %22 = vector.broadcast %21 : vector<1x1xf32> to vector<1x8xf32>
    %23 = arith.addf %20, %22 : vector<1x8xf32>
    %c0_22 = arith.constant 0 : index
    %c0_23 = arith.constant 0 : index
    %24 = vector.load %arg10[%c0_22, %c0_23] : memref<1x8xf32, #tpu.memory_space<vmem>>, vector<1x8xf32>
    tpu.vector_store %arg10[%c0_22, %c0_23], %23 {strides = array<i32>} : memref<1x8xf32, #tpu.memory_space<vmem>>, vector<1x8xf32>,
    return
  }
  func.func @transform_0(%arg0: i32) -> (i32, i32) {
    %c0_i32 = arith.constant 0 : i32
    %c0_i32_0 = arith.constant 0 : i32
    return %arg0, %c0_i32 : i32, i32
  }
  func.func @transform_1(%arg0: i32) -> (i32, i32) {
    %c0_i32 = arith.constant 0 : i32
    %c0_i32_0 = arith.constant 0 : i32
    return %arg0, %c0_i32 : i32, i32
  }
  func.func @transform_2(%arg0: i32) -> (i32, i32) {
    %c0_i32 = arith.constant 0 : i32
    %c0_i32_0 = arith.constant 0 : i32
    %c0_i32_1 = arith.constant 0 : i32
    return %c0_i32, %c0_i32_0 : i32, i32
  }
  func.func @transform_3(%arg0: i32) -> (i32, i32) {
    %c0_i32 = arith.constant 0 : i32
    %c0_i32_0 = arith.constant 0 : i32
    %c0_i32_1 = arith.constant 0 : i32
    return %c0_i32, %c0_i32_0 : i32, i32
  }
  func.func @transform_4(%arg0: i32) -> (i32, i32) {
    %c0_i32 = arith.constant 0 : i32
    %c0_i32_0 = arith.constant 0 : i32
    %c0_i32_1 = arith.constant 0 : i32
    return %c0_i32, %c0_i32_0 : i32, i32
  }
  func.func @transform_5(%arg0: i32) -> (i32, i32) {
    %c0_i32 = arith.constant 0 : i32
    %c0_i32_0 = arith.constant 0 : i32
    %c0_i32_1 = arith.constant 0 : i32
    return %c0_i32, %c0_i32_0 : i32, i32
  }
  func.func @transform_6(%arg0: i32) -> (i32, i32) {
    %c0_i32 = arith.constant 0 : i32
    %c0_i32_0 = arith.constant 0 : i32
    %c0_i32_1 = arith.constant 0 : i32
    return %c0_i32, %c0_i32_0 : i32, i32
  }
  func.func @transform_7(%arg0: i32) -> (i32, i32) {
    %c0_i32 = arith.constant 0 : i32
    %c0_i32_0 = arith.constant 0 : i32
    %c0_i32_1 = arith.constant 0 : i32
    return %c0_i32, %c0_i32_0 : i32, i32
  }
  func.func @transform_8(%arg0: i32) -> (i32, i32) {
    %c0_i32 = arith.constant 0 : i32
    %c0_i32_0 = arith.constant 0 : i32
    %c0_i32_1 = arith.constant 0 : i32
    return %c0_i32, %c0_i32_0 : i32, i32
  }
  func.func @transform_9(%arg0: i32) -> (i32, i32) {
    %c0_i32 = arith.constant 0 : i32
    %c0_i32_0 = arith.constant 0 : i32
    return %c0_i32, %arg0 : i32, i32
  }
}

</mosaic_0001>

<llo_original>
// kernel: tpu_custom_call.1
$region0: #{tpu_custom_call.1}
  #allocation0 [shape = 'u32[]', space=smem, size = 0x4, offset = 0x4, fixed_abs, tag = 'smem constant byte address 0x4 - core index']
  #allocation1 [shape = 'u32[144,128]{1,0:T(1,128)}', space=vmem, size = 0x12000, scoped, tag = 'internal scratch']
  #allocation2 [shape = 'f32[1,1]{1,0:T(1,128)S(1)}', space=vmem, size = 0x200, scoped, tag = 'scoped memory for tpu_custom_call.1']
  %s0 = inlined_call_operand.vmem [shape: f32[8,8], index: 0, kind: input, shape index: {}]
  %s1 = inlined_call_operand.vmem [shape: f32[8,4], index: 1, kind: input, shape index: {}]
  %s2 = inlined_call_operand.vmem [shape: f32[8,128], index: 2, kind: input, shape index: {}]
  %s3 = inlined_call_operand.vmem [shape: f32[1,128], index: 3, kind: input, shape index: {}]
  %s4 = inlined_call_operand.hbm [shape: f32[128,128], index: 4, kind: input, shape index: {}]
  %s5 = inlined_call_operand.vmem [shape: f32[4,128], index: 5, kind: input, shape index: {}]
  %s6 = inlined_call_operand.vmem [shape: f32[1,128], index: 6, kind: input, shape index: {}]
  %s7 = inlined_call_operand.vmem [shape: f32[1,128], index: 7, kind: input, shape index: {}]
  %s8 = inlined_call_operand.<no memory space> [shape: f32[1,1], index: 8, kind: input, shape index: {}]
  %s9 = inlined_call_operand.hbm [shape: f32[1,8], index: 9, kind: output, shape index: {}]
  %s10 = sld [smem:[#allocation0]]
  $region50: #{tpu_custom_call.1} parent=0
    _
  %s12 = ssub.s32 1, %s10
  %s13 = scalar_select 0, %s12, %s10
  %v14 = vstv %s8
  %15 = vst [vmem:[#allocation2] sm:$0x1] %v14
  $region1: #{tpu_custom_call.1} parent=0
    #allocation3 [shape = 'u8[65536]{0}', space=vmem, size = 0x10000, scoped, tag = 'input window, operand 4, single buffered']
    #allocation4 [shape = 's32[1]{0}', space=sflag, size = 0x4, scoped, tag = 'scoped memory for tpu_custom_call.1']
    #allocation5 [shape = 's32[1]{0}', space=sflag, size = 0x4, scoped, tag = 'scoped memory for tpu_custom_call.1']
    #allocation6 [shape = 'u8[512]{0}', space=vmem, size = 0x400, scoped, tag = 'output window, operand 0, single buffered']
    %16 = vsyncpa [#allocation4], 0
    %17 = vsyncpa [#allocation5], 0
    // Predicated region
    $region2: #{tpu_custom_call.1} parent=1 // pred_check
      _
    $region3: #{tpu_custom_call.1} parent=1 // pred_check_branch
      %19 = sbr.rel (0) target = $region5
    $region4: #{tpu_custom_call.1} parent=1 // pred_region
      _
    $region5: #{tpu_custom_call.1} parent=1 // pred_fallthru
      _
    // Predicated region
    $region6: #{tpu_custom_call.1} parent=1 // pred_check
      _
    $region7: #{tpu_custom_call.1} parent=1 // pred_check_branch
      %21 = sbr.rel (0) target = $region9
    $region8: #{tpu_custom_call.1} parent=1 // pred_region
      _
    $region9: #{tpu_custom_call.1} parent=1 // pred_fallthru
      _
    // Predicated region
    $region10: #{tpu_custom_call.1} parent=1 // pred_check
      _
    $region11: #{tpu_custom_call.1} parent=1 // pred_check_branch
      %23 = sbr.rel (0) target = $region13
    $region12: #{tpu_custom_call.1} parent=1 // pred_region
      _
    $region13: #{tpu_custom_call.1} parent=1 // pred_fallthru
      _
    // Predicated region
    $region14: #{tpu_custom_call.1} parent=1 // pred_check
      _
    $region15: #{tpu_custom_call.1} parent=1 // pred_check_branch
      %25 = sbr.rel (0) target = $region17
    $region16: #{tpu_custom_call.1} parent=1 // pred_region
      _
    $region17: #{tpu_custom_call.1} parent=1 // pred_fallthru
      _
    // Predicated region
    $region18: #{tpu_custom_call.1} parent=1 // pred_check
      _
    $region19: #{tpu_custom_call.1} parent=1 // pred_check_branch
      %27 = sbr.rel (0) target = $region21
    $region20: #{tpu_custom_call.1} parent=1 // pred_region
      %s29 = ssub.s32 2048, 2048
      %30 = vsyncadd [#allocation4], %s29
      %s31 = sshll.u32 [#allocation3], 4
      %s32 = int_to_ptr.vmem [resolvable:$true] %s31
      %37 = dma.hbm_to_vmem [thread:$0]  %s4, 2048, %s32, [#allocation4], 128, 128, 8
    $region21: #{tpu_custom_call.1} parent=1 // pred_fallthru
      _
    // Predicated region
    $region22: #{tpu_custom_call.1} parent=1 // pred_check
      _
    $region23: #{tpu_custom_call.1} parent=1 // pred_check_branch
      %39 = sbr.rel (0) target = $region25
    $region24: #{tpu_custom_call.1} parent=1 // pred_region
      _
    $region25: #{tpu_custom_call.1} parent=1 // pred_fallthru
      _
    // Predicated region
    $region26: #{tpu_custom_call.1} parent=1 // pred_check
      _
    $region27: #{tpu_custom_call.1} parent=1 // pred_check_branch
      %41 = sbr.rel (0) target = $region29
    $region28: #{tpu_custom_call.1} parent=1 // pred_region
      _
    $region29: #{tpu_custom_call.1} parent=1 // pred_fallthru
      _
    // Predicated region
    $region30: #{tpu_custom_call.1} parent=1 // pred_check
      _
    $region31: #{tpu_custom_call.1} parent=1 // pred_check_branch
      %43 = sbr.rel (0) target = $region33
    $region32: #{tpu_custom_call.1} parent=1 // pred_region
      _
    $region33: #{tpu_custom_call.1} parent=1 // pred_fallthru
      _
    // Predicated region
    $region34: #{tpu_custom_call.1} parent=1 // pred_check
      _
    $region35: #{tpu_custom_call.1} parent=1 // pred_check_branch
      %45 = sbr.rel (0) target = $region37
    $region36: #{tpu_custom_call.1} parent=1 // pred_region
      _
    $region37: #{tpu_custom_call.1} parent=1 // pred_fallthru
      _
    // Predicated region
    $region38: #{tpu_custom_call.1} parent=1 // pred_check
      _
    $region39: #{tpu_custom_call.1} parent=1 // pred_check_branch
      %47 = sbr.rel (0) target = $region41
    $region40: #{tpu_custom_call.1} parent=1 // pred_region
      %48 = dma.done [#allocation4], 2048
    $region41: #{tpu_custom_call.1} parent=1 // pred_fallthru
      _
    %v49 = vld [vmem:[%s0] sm:$0xff]
    %v50 = vld [vmem:[%s2] sm:$0xff]
    %v51 = vld [vmem:[%s3] sm:$0x1]
    %v53 = vlaneseq
    %v54 = vshrl.u32 %v53, 7
    %v55 = vsub.s32 0, %v54
    %v56 = vrot.slane %v51, %v55
    %vm58 = vcmask 64512
    %v60 = vsel %vm58, %v49, 0
    %62 = vmatprep.subr.mxu0 0.0
    %63 = vmatpush1.msra.mxu0 %v50
    %64 = vmatprep.subr.mxu0 0.0
    %65 = vmatpush1.msra.mxu0 0.0
    %66 = vmatprep.subr.mxu0 0.0
    %67 = vmatpush1.msra.mxu0 0.0
    %68 = vmatprep.subr.mxu0 0.0
    %69 = vmatpush1.msra.mxu0 0.0
    %70 = vmatprep.subr.mxu0 0.0
    %71 = vmatpush1.msra.mxu0 0.0
    %72 = vmatprep.subr.mxu0 0.0
    %73 = vmatpush1.msra.mxu0 0.0
    %74 = vmatprep.subr.mxu0 0.0
    %75 = vmatpush1.msra.mxu0 0.0
    %76 = vmatprep.subr.mxu0 0.0
    %77 = vmatpush1.msra.mxu0 0.0
    %78 = vmatprep.subr.mxu0 0.0
    %79 = vmatpush1.msra.mxu0 0.0
    %80 = vmatprep.subr.mxu0 0.0
    %81 = vmatpush1.msra.mxu0 0.0
    %82 = vmatprep.subr.mxu0 0.0
    %83 = vmatpush1.msra.mxu0 0.0
    %84 = vmatprep.subr.mxu0 0.0
    %85 = vmatpush1.msra.mxu0 0.0
    %86 = vmatprep.subr.mxu0 0.0
    %87 = vmatpush1.msra.mxu0 0.0
    %88 = vmatprep.subr.mxu0 0.0
    %89 = vmatpush1.msra.mxu0 0.0
    %90 = vmatprep.subr.mxu0 0.0
    %91 = vmatpush1.msra.mxu0 0.0
    %92 = vmatprep.subr.mxu0 0.0
    %93 = vmatpush1.msra.mxu0 0.0
    %94 = vmatprep.subr.mxu0 0.0
    %95 = vmatpush1.msra.mxu0 0.0
    %96 = vmatprep.subr.mxu0 0.0
    %97 = vmatpush1.msra.mxu0 0.0
    %98 = vmatprep.subr.mxu0 0.0
    %99 = vmatpush1.msra.mxu0 0.0
    %100 = vmatprep.subr.mxu0 0.0
    %101 = vmatpush1.msra.mxu0 0.0
    %102 = vmatprep.subr.mxu0 0.0
    %103 = vmatpush1.msra.mxu0 0.0
    %104 = vmatprep.subr.mxu0 0.0
    %105 = vmatpush1.msra.mxu0 0.0
    %106 = vmatprep.subr.mxu0 0.0
    %107 = vmatpush1.msra.mxu0 0.0
    %108 = vmatprep.subr.mxu0 0.0
    %109 = vmatpush1.msra.mxu0 0.0
    %110 = vmatprep.subr.mxu0 0.0
    %111 = vmatpush1.msra.mxu0 0.0
    %112 = vmatprep.subr.mxu0 0.0
    %113 = vmatpush1.msra.mxu0 0.0
    %114 = vmatprep.subr.mxu0 0.0
    %115 = vmatpush1.msra.mxu0 0.0
    %116 = vmatprep.subr.mxu0 0.0
    %117 = vmatpush1.msra.mxu0 0.0
    %118 = vmatprep.subr.mxu0 0.0
    %119 = vmatpush1.msra.mxu0 0.0
    %120 = vmatprep.subr.mxu0 0.0
    %121 = vmatpush1.msra.mxu0 0.0
    %122 = vmatprep.subr.mxu0 0.0
    %123 = vmatpush1.msra.mxu0 0.0
    %124 = vmatprep.subr.mxu0 0.0
    %125 = vmatpush1.msra.mxu0 0.0
    %126 = vmatprep.mubr.f32.mxu0 0.0
    %127 = vmatmul.mubr.f32.gmra.mrb[0].mxu0 %v60
    %v128 = vpop.f32.mrb[0].mxu0
    %v129 = vadd.f32 %v56, %v128
    %v130 = vpop.f32.mrb[0].mxu0
    %131 = vdwg.mxu0
    %v132 = vmax.f32 %v129, 0.0
    %v133 = vld [vmem:[#allocation3] sm:$0xff]
    %v134 = vld [vmem:[#allocation3 + $0x8] sm:$0xff]
    %v135 = vld [vmem:[#allocation3 + $0x10] sm:$0xff]
    %v136 = vld [vmem:[#allocation3 + $0x18] sm:$0xff]
    %v137 = vld [vmem:[#allocation3 + $0x20] sm:$0xff]
    %v138 = vld [vmem:[#allocation3 + $0x28] sm:$0xff]
    %v139 = vld [vmem:[#allocation3 + $0x30] sm:$0xff]
    %v140 = vld [vmem:[#allocation3 + $0x38] sm:$0xff]
    %v141 = vld [vmem:[#allocation3 + $0x40] sm:$0xff]
    %v142 = vld [vmem:[#allocation3 + $0x48] sm:$0xff]
    %v143 = vld [vmem:[#allocation3 + $0x50] sm:$0xff]
    %v144 = vld [vmem:[#allocation3 + $0x58] sm:$0xff]
    %v145 = vld [vmem:[#allocation3 + $0x60] sm:$0xff]
    %v146 = vld [vmem:[#allocation3 + $0x68] sm:$0xff]
    %v147 = vld [vmem:[#allocation3 + $0x70] sm:$0xff]
    %v148 = vld [vmem:[#allocation3 + $0x78] sm:$0xff]
    %v149 = vld [vmem:[%s1] sm:$0xff]
    %v150 = vld [vmem:[%s5] sm:$0xf]
    %vm151 = vcmask 31744
    %v153 = vsel %vm151, %v149, 0
    %vm155 = vcmask 1043456
    %v157 = vsel %vm155, %v150, 0
    %159 = vmatprep.subr.mxu0 0.0
    %160 = vmatpush1.msra.mxu0 %v157
    %161 = vmatprep.subr.mxu0 0.0
    %162 = vmatpush1.msra.mxu0 0.0
    %163 = vmatprep.subr.mxu0 0.0
    %164 = vmatpush1.msra.mxu0 0.0
    %165 = vmatprep.subr.mxu0 0.0
    %166 = vmatpush1.msra.mxu0 0.0
    %167 = vmatprep.subr.mxu0 0.0
    %168 = vmatpush1.msra.mxu0 0.0
    %169 = vmatprep.subr.mxu0 0.0
    %170 = vmatpush1.msra.mxu0 0.0
    %171 = vmatprep.subr.mxu0 0.0
    %172 = vmatpush1.msra.mxu0 0.0
    %173 = vmatprep.subr.mxu0 0.0
    %174 = vmatpush1.msra.mxu0 0.0
    %175 = vmatprep.subr.mxu0 0.0
    %176 = vmatpush1.msra.mxu0 0.0
    %177 = vmatprep.subr.mxu0 0.0
    %178 = vmatpush1.msra.mxu0 0.0
    %179 = vmatprep.subr.mxu0 0.0
    %180 = vmatpush1.msra.mxu0 0.0
    %181 = vmatprep.subr.mxu0 0.0
    %182 = vmatpush1.msra.mxu0 0.0
    %183 = vmatprep.subr.mxu0 0.0
    %184 = vmatpush1.msra.mxu0 0.0
    %185 = vmatprep.subr.mxu0 0.0
    %186 = vmatpush1.msra.mxu0 0.0
    %187 = vmatprep.subr.mxu0 0.0
    %188 = vmatpush1.msra.mxu0 0.0
    %189 = vmatprep.subr.mxu0 0.0
    %190 = vmatpush1.msra.mxu0 0.0
    %191 = vmatprep.subr.mxu0 0.0
    %192 = vmatpush1.msra.mxu0 0.0
    %193 = vmatprep.subr.mxu0 0.0
    %194 = vmatpush1.msra.mxu0 0.0
    %195 = vmatprep.subr.mxu0 0.0
    %196 = vmatpush1.msra.mxu0 0.0
    %197 = vmatprep.subr.mxu0 0.0
    %198 = vmatpush1.msra.mxu0 0.0
    %199 = vmatprep.subr.mxu0 0.0
    %200 = vmatpush1.msra.mxu0 0.0
    %201 = vmatprep.subr.mxu0 0.0
    %202 = vmatpush1.msra.mxu0 0.0
    %203 = vmatprep.subr.mxu0 0.0
    %204 = vmatpush1.msra.mxu0 0.0
    %205 = vmatprep.subr.mxu0 0.0
    %206 = vmatpush1.msra.mxu0 0.0
    %207 = vmatprep.subr.mxu0 0.0
    %208 = vmatpush1.msra.mxu0 0.0
    %209 = vmatprep.subr.mxu0 0.0
    %210 = vmatpush1.msra.mxu0 0.0
    %211 = vmatprep.subr.mxu0 0.0
    %212 = vmatpush1.msra.mxu0 0.0
    %213 = vmatprep.subr.mxu0 0.0
    %214 = vmatpush1.msra.mxu0 0.0
    %215 = vmatprep.subr.mxu0 0.0
    %216 = vmatpush1.msra.mxu0 0.0
    %217 = vmatprep.subr.mxu0 0.0
    %218 = vmatpush1.msra.mxu0 0.0
    %219 = vmatprep.subr.mxu0 0.0
    %220 = vmatpush1.msra.mxu0 0.0
    %221 = vmatprep.subr.mxu0 0.0
    %222 = vmatpush1.msra.mxu0 0.0
    %223 = vmatprep.mubr.f32.mxu0 0.0
    %224 = vmatmul.mubr.f32.gmra.mrb[0].mxu0 %v153
    %v225 = vpop.f32.mrb[0].mxu0
    %v226 = vadd.f32 0.0, %v225
    %v227 = vpop.f32.mrb[0].mxu0
    %228 = vdwg.mxu0
    %229 = vmatprep.subr.mxu0 0.0
    %230 = vmatpush1.msra.mxu0 %v133
    %231 = vmatprep.subr.mxu0 0.0
    %232 = vmatpush1.msra.mxu0 %v134
    %233 = vmatprep.subr.mxu0 0.0
    %234 = vmatpush1.msra.mxu0 %v135
    %235 = vmatprep.subr.mxu0 0.0
    %236 = vmatpush1.msra.mxu0 %v136
    %237 = vmatprep.subr.mxu0 0.0
    %238 = vmatpush1.msra.mxu0 %v137
    %239 = vmatprep.subr.mxu0 0.0
    %240 = vmatpush1.msra.mxu0 %v138
    %241 = vmatprep.subr.mxu0 0.0
    %242 = vmatpush1.msra.mxu0 %v139
    %243 = vmatprep.subr.mxu0 0.0
    %244 = vmatpush1.msra.mxu0 %v140
    %245 = vmatprep.subr.mxu0 0.0
    %246 = vmatpush1.msra.mxu0 %v141
    %247 = vmatprep.subr.mxu0 0.0
    %248 = vmatpush1.msra.mxu0 %v142
    %249 = vmatprep.subr.mxu0 0.0
    %250 = vmatpush1.msra.mxu0 %v143
    %251 = vmatprep.subr.mxu0 0.0
    %252 = vmatpush1.msra.mxu0 %v144
    %253 = vmatprep.subr.mxu0 0.0
    %254 = vmatpush1.msra.mxu0 %v145
    %255 = vmatprep.subr.mxu0 0.0
    %256 = vmatpush1.msra.mxu0 %v146
    %257 = vmatprep.subr.mxu0 0.0
    %258 = vmatpush1.msra.mxu0 %v147
    %259 = vmatprep.subr.mxu0 0.0
    %260 = vmatpush1.msra.mxu0 %v148
    %261 = vmatprep.subr.mxu0 0.0
    %262 = vmatpush1.msra.mxu0 0.0
    %263 = vmatprep.subr.mxu0 0.0
    %264 = vmatpush1.msra.mxu0 0.0
    %265 = vmatprep.subr.mxu0 0.0
    %266 = vmatpush1.msra.mxu0 0.0
    %267 = vmatprep.subr.mxu0 0.0
    %268 = vmatpush1.msra.mxu0 0.0
    %269 = vmatprep.subr.mxu0 0.0
    %270 = vmatpush1.msra.mxu0 0.0
    %271 = vmatprep.subr.mxu0 0.0
    %272 = vmatpush1.msra.mxu0 0.0
    %273 = vmatprep.subr.mxu0 0.0
    %274 = vmatpush1.msra.mxu0 0.0
    %275 = vmatprep.subr.mxu0 0.0
    %276 = vmatpush1.msra.mxu0 0.0
    %277 = vmatprep.subr.mxu0 0.0
    %278 = vmatpush1.msra.mxu0 0.0
    %279 = vmatprep.subr.mxu0 0.0
    %280 = vmatpush1.msra.mxu0 0.0
    %281 = vmatprep.subr.mxu0 0.0
    %282 = vmatpush1.msra.mxu0 0.0
    %283 = vmatprep.subr.mxu0 0.0
    %284 = vmatpush1.msra.mxu0 0.0
    %285 = vmatprep.subr.mxu0 0.0
    %286 = vmatpush1.msra.mxu0 0.0
    %287 = vmatprep.subr.mxu0 0.0
    %288 = vmatpush1.msra.mxu0 0.0
    %289 = vmatprep.subr.mxu0 0.0
    %290 = vmatpush1.msra.mxu0 0.0
    %291 = vmatprep.subr.mxu0 0.0
    %292 = vmatpush1.msra.mxu0 0.0
    %293 = vmatprep.mubr.f32.mxu0 0.0
    %294 = vmatmul.mubr.f32.gmra.mrb[0].mxu0 %v132
    %v295 = vpop.f32.mrb[0].mxu0
    %v296 = vadd.f32 %v226, %v295
    %v297 = vpop.f32.mrb[0].mxu0
    %298 = vdwg.mxu0
    %v299 = vld [vmem:[%s6] sm:$0x1]
    %v301 = vlaneseq
    %v302 = vshrl.u32 %v301, 7
    %v303 = vsub.s32 0, %v302
    %v304 = vrot.slane %v299, %v303
    %v306 = vadd.f32 %v296, %v304
    %v307 = vmax.f32 %v306, 0.0
    %v308 = vld [vmem:[%s7] sm:$0x1]
    %v309 = vld [vmem:[#allocation2] sm:$0x1]
    %311 = vset.pattern.permute.xlu0 0
    %312 = vperm.xlu0 %311, %v309
    %v313 = vpop.permute.xlu0 %312
    %v315 = vlaneseq
    %v316 = vshrl.u32 %v315, 7
    %v317 = vsub.s32 0, %v316
    %v318 = vrot.slane %v313, %v317
    %319 = vmatprep.subr.mxu0 0.0
    %320 = vmatpush1.xpose.msra.mxu0 %v307
    %321 = vmatprep.subr.mxu0 0.0
    %322 = vmatpush1.xpose.msra.mxu0 0.0
    %323 = vmatprep.subr.mxu0 0.0
    %324 = vmatpush1.xpose.msra.mxu0 0.0
    %325 = vmatprep.subr.mxu0 0.0
    %326 = vmatpush1.xpose.msra.mxu0 0.0
    %327 = vmatprep.subr.mxu0 0.0
    %328 = vmatpush1.xpose.msra.mxu0 0.0
    %329 = vmatprep.subr.mxu0 0.0
    %330 = vmatpush1.xpose.msra.mxu0 0.0
    %331 = vmatprep.subr.mxu0 0.0
    %332 = vmatpush1.xpose.msra.mxu0 0.0
    %333 = vmatprep.subr.mxu0 0.0
    %334 = vmatpush1.xpose.msra.mxu0 0.0
    %335 = vmatprep.subr.mxu0 0.0
    %336 = vmatpush1.xpose.msra.mxu0 0.0
    %337 = vmatprep.subr.mxu0 0.0
    %338 = vmatpush1.xpose.msra.mxu0 0.0
    %339 = vmatprep.subr.mxu0 0.0
    %340 = vmatpush1.xpose.msra.mxu0 0.0
    %341 = vmatprep.subr.mxu0 0.0
    %342 = vmatpush1.xpose.msra.mxu0 0.0
    %343 = vmatprep.subr.mxu0 0.0
    %344 = vmatpush1.xpose.msra.mxu0 0.0
    %345 = vmatprep.subr.mxu0 0.0
    %346 = vmatpush1.xpose.msra.mxu0 0.0
    %347 = vmatprep.subr.mxu0 0.0
    %348 = vmatpush1.xpose.msra.mxu0 0.0
    %349 = vmatprep.subr.mxu0 0.0
    %350 = vmatpush1.xpose.msra.mxu0 0.0
    %351 = vmatprep.subr.mxu0 0.0
    %352 = vmatpush1.xpose.msra.mxu0 0.0
    %353 = vmatprep.subr.mxu0 0.0
    %354 = vmatpush1.xpose.msra.mxu0 0.0
    %355 = vmatprep.subr.mxu0 0.0
    %356 = vmatpush1.xpose.msra.mxu0 0.0
    %357 = vmatprep.subr.mxu0 0.0
    %358 = vmatpush1.xpose.msra.mxu0 0.0
    %359 = vmatprep.subr.mxu0 0.0
    %360 = vmatpush1.xpose.msra.mxu0 0.0
    %361 = vmatprep.subr.mxu0 0.0
    %362 = vmatpush1.xpose.msra.mxu0 0.0
    %363 = vmatprep.subr.mxu0 0.0
    %364 = vmatpush1.xpose.msra.mxu0 0.0
    %365 = vmatprep.subr.mxu0 0.0
    %366 = vmatpush1.xpose.msra.mxu0 0.0
    %367 = vmatprep.subr.mxu0 0.0
    %368 = vmatpush1.xpose.msra.mxu0 0.0
    %369 = vmatprep.subr.mxu0 0.0
    %370 = vmatpush1.xpose.msra.mxu0 0.0
    %371 = vmatprep.subr.mxu0 0.0
    %372 = vmatpush1.xpose.msra.mxu0 0.0
    %373 = vmatprep.subr.mxu0 0.0
    %374 = vmatpush1.xpose.msra.mxu0 0.0
    %375 = vmatprep.subr.mxu0 0.0
    %376 = vmatpush1.xpose.msra.mxu0 0.0
    %377 = vmatprep.subr.mxu0 0.0
    %378 = vmatpush1.xpose.msra.mxu0 0.0
    %379 = vmatprep.subr.mxu0 0.0
    %380 = vmatpush1.xpose.msra.mxu0 0.0
    %381 = vmatprep.subr.mxu0 0.0
    %382 = vmatpush1.xpose.msra.mxu0 0.0
    %383 = vmatprep.mubr.f32.mxu0 0.0
    %384 = vmatmul.mubr.f32.gmra.mrb[0].mxu0 %v308
    %v385 = vpop.f32.mrb[0].mxu0
    %v386 = vadd.f32 %v318, %v385
    %v387 = vpop.f32.mrb[0].mxu0
    %388 = vdwg.mxu0
    %vm389 = vcmask 57344
    %390 = vst.msk [vmem:[#allocation6] sm:$0x1] %vm389, %v386
    // Predicated region
    $region42: #{tpu_custom_call.1} parent=1 // pred_check
      _
    $region43: #{tpu_custom_call.1} parent=1 // pred_check_branch
      %392 = sbr.rel (0) target = $region45
    $region44: #{tpu_custom_call.1} parent=1 // pred_region
      %s394 = ssub.s32 16, 16
      %395 = vsyncadd [#allocation5], %s394
      %s397 = sshll.u32 [#allocation6], 4
      %s398 = int_to_ptr.vmem [resolvable:$true] %s397
      %400 = dma.vmem_to_hbm [thread:$0]  %s398, 16, %s9, [#allocation5]
    $region45: #{tpu_custom_call.1} parent=1 // pred_fallthru
      _
    // Predicated region
    $region46: #{tpu_custom_call.1} parent=1 // pred_check
      _
    $region47: #{tpu_custom_call.1} parent=1 // pred_check_branch
      %402 = sbr.rel (0) target = $region49
    $region48: #{tpu_custom_call.1} parent=1 // pred_region
      %403 = dma.done [#allocation5], 16
    $region49: #{tpu_custom_call.1} parent=1 // pred_fallthru
      _
    %404 = vsyncpa [#allocation4], 1
    %405 = vsyncpa [#allocation5], 1

</llo_original>
